<compile_context>
chip_gen: v6e
topology: v6e:2x2x1
jax: 0.10.0
libtpu: 0.0.40
codegen_flags: <defaults>
</compile_context>

<pallas_src>
import jax
import jax.numpy as jnp
from jax.experimental import pallas as pl
from jax.experimental.pallas import tpu as pltpu


def _interchannel_kernel(depth_ref,                       # scalar prefetch (used by index_maps)
                         coef_y_ref, coef_yu_ref, sp_y_ref, sp_yu_ref,
                         w_cy_ref, b_cy_ref,
                         w_cyu_ref, b_cyu_ref,
                         w_sy_ref, b_sy_ref,
                         w_syu_ref, b_syu_ref,
                         out_ref):
    del depth_ref  # only consumed by the BlockSpec index_maps

    # ---- K=1 / K=2 linears on the VPU (broadcast mul-add; MXU would waste a
    # full vmatmul pipeline on <1% utilization) --------------------------------
    ctx_coef_y = coef_y_ref[...] * w_cy_ref[...] + b_cy_ref[...]            # (TM, C)
    coef_yu = coef_yu_ref[...]
    ctx_coef_yu = (coef_yu[:, 0:1] * w_cyu_ref[0:1, :]
                   + coef_yu[:, 1:2] * w_cyu_ref[1:2, :]
                   + b_cyu_ref[...])                                         # (TM, C)

    # ---- C x C linears on the MXU, f32 accumulation --------------------------
    ctx_sp_y = jnp.dot(sp_y_ref[...], w_sy_ref[...],
                       preferred_element_type=jnp.float32) + b_sy_ref[...]   # (TM, C)
    ctx_sp_yu = jnp.dot(sp_yu_ref[...], w_syu_ref[...],
                        preferred_element_type=jnp.float32) + b_syu_ref[...] # (TM, C)

    # Single lane-dense (TM, 4C) store: [ctx_y | ctx_yu]
    out_ref[...] = jnp.concatenate(
        [ctx_coef_y, ctx_sp_y, ctx_coef_yu, ctx_sp_yu], axis=-1
    ).astype(out_ref.dtype)


def _round_up(x, m):
    return ((x + m - 1) // m) * m


def inter_channel_forward(coef_y, coef_yu, spatial_y, spatial_yu, params,
                          depth_idx, *, row_tile=512):
    """Forward pass.  params: dict of stacked per-depth parameters."""
    n = coef_y.shape[0]
    c = params["w_sy"].shape[-1]

    # Row tile: large for pipelining, but never bigger than the (8-padded) input.
    tm = min(row_tile, _round_up(max(n, 1), 8))
    n_pad = _round_up(n, tm)

    def pad_rows(x):
        if n_pad == n:
            return x
        return jnp.pad(x, ((0, n_pad - n), (0, 0)))

    coef_y_p = pad_rows(coef_y)
    coef_yu_p = pad_rows(coef_yu)
    spatial_y_p = pad_rows(spatial_y)
    spatial_yu_p = pad_rows(spatial_yu)

    depth = jnp.asarray([depth_idx], dtype=jnp.int32)   # scalar prefetch

    # Row-tiled point tensors; weights select depth layer via the prefetched
    # index and return the same block every grid step (stay VMEM-resident).
    def row(width):
        return pl.BlockSpec((tm, width), lambda i, d: (i, 0))

    def wsel(shape_tail):
        return pl.BlockSpec((None,) + shape_tail, lambda i, d: (d[0], 0, 0))

    grid_spec = pltpu.PrefetchScalarGridSpec(
        num_scalar_prefetch=1,
        grid=(n_pad // tm,),
        in_specs=[
            row(1), row(2), row(c), row(c),
            wsel((1, c)), wsel((1, c)),      # w_cy,  b_cy
            wsel((2, c)), wsel((1, c)),      # w_cyu, b_cyu
            wsel((c, c)), wsel((1, c)),      # w_sy,  b_sy
            wsel((c, c)), wsel((1, c)),      # w_syu, b_syu
        ],
        out_specs=pl.BlockSpec((tm, 4 * c), lambda i, d: (i, 0)),
    )

    packed = pl.pallas_call(
        _interchannel_kernel,
        out_shape=jax.ShapeDtypeStruct((n_pad, 4 * c), jnp.float32),
        grid_spec=grid_spec,
        compiler_params=pltpu.CompilerParams(
            dimension_semantics=("parallel",)),
    )(depth, coef_y_p, coef_yu_p, spatial_y_p, spatial_yu_p,
      params["w_cy"], params["b_cy"],
      params["w_cyu"], params["b_cyu"],
      params["w_sy"], params["b_sy"],
      params["w_syu"], params["b_syu"])

    # Cheap wrapper-side reshuffle: [N, 4C] -> [N, 3, 2C] with a zero plane.
    packed = packed[:n]
    ctx_y = packed[:, :2 * c][:, None, :]
    ctx_yu = packed[:, 2 * c:][:, None, :]
    return jnp.concatenate([jnp.zeros_like(ctx_y), ctx_y, ctx_yu], axis=1)


def make_params(key, out_channel, depth):
    """Parameter init mirroring the module's __init__ shapes.

    nn.Linear(in, out) -> weight stored as [in, out], bias as [1, out]
    (kept 2-D for clean TPU lane layout).  Each stack has depth*3 entries.
    """
    nlayers = depth * 3
    ks = jax.random.split(key, 8)

    def init_w(k, shape):
        return jax.random.normal(k, shape, jnp.float32) * 0.05

    return {
        "w_cy":  init_w(ks[0], (nlayers, 1, out_channel)),
        "b_cy":  init_w(ks[1], (nlayers, 1, out_channel)),
        "w_cyu": init_w(ks[2], (nlayers, 2, out_channel)),
        "b_cyu": init_w(ks[3], (nlayers, 1, out_channel)),
        "w_sy":  init_w(ks[4], (nlayers, out_channel, out_channel)),
        "b_sy":  init_w(ks[5], (nlayers, 1, out_channel)),
        "w_syu": init_w(ks[6], (nlayers, out_channel, out_channel)),
        "b_syu": init_w(ks[7], (nlayers, 1, out_channel)),
    }


def reference_forward(coef_y, coef_yu, spatial_y, spatial_yu, params, depth_idx):
    """Pure-JAX reference of the PyTorch forward (for verification)."""
    w_cy, b_cy = params["w_cy"][depth_idx], params["b_cy"][depth_idx]
    w_cyu, b_cyu = params["w_cyu"][depth_idx], params["b_cyu"][depth_idx]
    w_sy, b_sy = params["w_sy"][depth_idx], params["b_sy"][depth_idx]
    w_syu, b_syu = params["w_syu"][depth_idx], params["b_syu"][depth_idx]
    ctx_y = jnp.concatenate(
        [coef_y @ w_cy + b_cy, spatial_y @ w_sy + b_sy], -1)[:, None]
    ctx_yu = jnp.concatenate(
        [coef_yu @ w_cyu + b_cyu, spatial_yu @ w_syu + b_syu], -1)[:, None]
    return jnp.concatenate([jnp.zeros_like(ctx_y), ctx_y, ctx_yu], axis=1)


if __name__ == "__main__":
    N = 16            # number of points
    OUT_CHANNEL = 32  # out_channel
    DEPTH = 2         # -> 6 linears per list
    DEPTH_IDX = 1

    key = jax.random.PRNGKey(0)
    k_p, k1, k2, k3, k4 = jax.random.split(key, 5)

    params = make_params(k_p, OUT_CHANNEL, DEPTH)

    coef_y = jax.random.normal(k1, (N, 1), jnp.float32)
    coef_yu = jax.random.normal(k2, (N, 2), jnp.float32)
    spatial_y = jax.random.normal(k3, (N, OUT_CHANNEL), jnp.float32)
    spatial_yu = jax.random.normal(k4, (N, OUT_CHANNEL), jnp.float32)

    out = inter_channel_forward(coef_y, coef_yu, spatial_y, spatial_yu,
                                params, DEPTH_IDX)
    out = jax.block_until_ready(out)

    ref = reference_forward(coef_y, coef_yu, spatial_y, spatial_yu,
                            params, DEPTH_IDX)
    assert out.shape == (N, 3, 2 * OUT_CHANNEL), out.shape
    assert jnp.allclose(out, ref, atol=1e-4, rtol=1e-4), "mismatch vs reference"

    print("KERNEL_OK")
</pallas_src>

<mosaic_0001>
module attributes {stable_mosaic.version = 11 : i64} {
  func.func @_interchannel_kernel(%arg0: i32, %arg1: memref<1xi32, #tpu.memory_space<smem>>, %arg2: memref<16x1xf32, #tpu.memory_space<vmem>>, %arg3: memref<16x2xf32, #tpu.memory_space<vmem>>, %arg4: memref<16x32xf32, #tpu.memory_space<vmem>>, %arg5: memref<16x32xf32, #tpu.memory_space<vmem>>, %arg6: memref<1x1x32xf32, #tpu.memory_space<vmem>>, %arg7: memref<1x1x32xf32, #tpu.memory_space<vmem>>, %arg8: memref<1x2x32xf32, #tpu.memory_space<vmem>>, %arg9: memref<1x1x32xf32, #tpu.memory_space<vmem>>, %arg10: memref<1x32x32xf32, #tpu.memory_space<vmem>>, %arg11: memref<1x1x32xf32, #tpu.memory_space<vmem>>, %arg12: memref<1x32x32xf32, #tpu.memory_space<vmem>>, %arg13: memref<1x1x32xf32, #tpu.memory_space<vmem>>, %arg14: memref<16x128xf32, #tpu.memory_space<vmem>>) attributes {dimension_semantics = [#tpu.dimension_semantics<parallel>], iteration_bounds = array<i64: 1>, scalar_prefetch = 1 : i64, scratch_operands = 0 : i64, tpu.core_type = #tpu.core_type<tc>, window_params = [{transform_indices = @transform_0, window_bounds = array<i64: 16, 1>}, {transform_indices = @transform_1, window_bounds = array<i64: 16, 2>}, {transform_indices = @transform_2, window_bounds = array<i64: 16, 32>}, {transform_indices = @transform_3, window_bounds = array<i64: 16, 32>}, {transform_indices = @transform_4, window_bounds = array<i64: 1, 1, 32>}, {transform_indices = @transform_5, window_bounds = array<i64: 1, 1, 32>}, {transform_indices = @transform_6, window_bounds = array<i64: 1, 2, 32>}, {transform_indices = @transform_7, window_bounds = array<i64: 1, 1, 32>}, {transform_indices = @transform_8, window_bounds = array<i64: 1, 32, 32>}, {transform_indices = @transform_9, window_bounds = array<i64: 1, 1, 32>}, {transform_indices = @transform_10, window_bounds = array<i64: 1, 32, 32>}, {transform_indices = @transform_11, window_bounds = array<i64: 1, 1, 32>}, {transform_indices = @transform_12, window_bounds = array<i64: 16, 128>}]} {
    %c0 = arith.constant 0 : index
    %c0_0 = arith.constant 0 : index
    %0 = vector.load %arg2[%c0, %c0_0] : memref<16x1xf32, #tpu.memory_space<vmem>>, vector<16x1xf32>
    %c0_1 = arith.constant 0 : index
    %c0_2 = arith.constant 0 : index
    %c0_3 = arith.constant 0 : index
    %1 = vector.load %arg6[%c0_1, %c0_2, %c0_3] : memref<1x1x32xf32, #tpu.memory_space<vmem>>, vector<1x1x32xf32>
    %2 = vector.shape_cast %1 : vector<1x1x32xf32> to vector<1x32xf32>
    %3 = vector.broadcast %0 : vector<16x1xf32> to vector<16x32xf32>
    %4 = vector.broadcast %2 : vector<1x32xf32> to vector<16x32xf32>
    %5 = arith.mulf %3, %4 : vector<16x32xf32>
    %c0_4 = arith.constant 0 : index
    %c0_5 = arith.constant 0 : index
    %c0_6 = arith.constant 0 : index
    %6 = vector.load %arg7[%c0_4, %c0_5, %c0_6] : memref<1x1x32xf32, #tpu.memory_space<vmem>>, vector<1x1x32xf32>
    %7 = vector.shape_cast %6 : vector<1x1x32xf32> to vector<1x32xf32>
    %8 = vector.broadcast %7 : vector<1x32xf32> to vector<16x32xf32>
    %9 = arith.addf %5, %8 : vector<16x32xf32>
    %c0_7 = arith.constant 0 : index
    %c0_8 = arith.constant 0 : index
    %10 = vector.load %arg3[%c0_7, %c0_8] : memref<16x2xf32, #tpu.memory_space<vmem>>, vector<16x2xf32>
    %11 = vector.extract_strided_slice %10 {offsets = [0, 0], sizes = [16, 1], strides = [1, 1]} : vector<16x2xf32> to vector<16x1xf32>
    %c0_9 = arith.constant 0 : index
    %c0_10 = arith.constant 0 : index
    %c0_11 = arith.constant 0 : index
    %12 = vector.load %arg8[%c0_9, %c0_10, %c0_11] : memref<1x2x32xf32, #tpu.memory_space<vmem>>, vector<1x1x32xf32>
    %13 = vector.shape_cast %12 : vector<1x1x32xf32> to vector<1x32xf32>
    %14 = vector.broadcast %11 : vector<16x1xf32> to vector<16x32xf32>
    %15 = vector.broadcast %13 : vector<1x32xf32> to vector<16x32xf32>
    %16 = arith.mulf %14, %15 : vector<16x32xf32>
    %17 = vector.extract_strided_slice %10 {offsets = [0, 1], sizes = [16, 1], strides = [1, 1]} : vector<16x2xf32> to vector<16x1xf32>
    %c0_12 = arith.constant 0 : index
    %c1 = arith.constant 1 : index
    %c0_13 = arith.constant 0 : index
    %18 = vector.load %arg8[%c0_12, %c1, %c0_13] : memref<1x2x32xf32, #tpu.memory_space<vmem>>, vector<1x1x32xf32>
    %19 = vector.shape_cast %18 : vector<1x1x32xf32> to vector<1x32xf32>
    %20 = vector.broadcast %17 : vector<16x1xf32> to vector<16x32xf32>
    %21 = vector.broadcast %19 : vector<1x32xf32> to vector<16x32xf32>
    %22 = arith.mulf %20, %21 : vector<16x32xf32>
    %23 = arith.addf %16, %22 : vector<16x32xf32>
    %c0_14 = arith.constant 0 : index
    %c0_15 = arith.constant 0 : index
    %c0_16 = arith.constant 0 : index
    %24 = vector.load %arg9[%c0_14, %c0_15, %c0_16] : memref<1x1x32xf32, #tpu.memory_space<vmem>>, vector<1x1x32xf32>
    %25 = vector.shape_cast %24 : vector<1x1x32xf32> to vector<1x32xf32>
    %26 = vector.broadcast %25 : vector<1x32xf32> to vector<16x32xf32>
    %27 = arith.addf %23, %26 : vector<16x32xf32>
    %c0_17 = arith.constant 0 : index
    %c0_18 = arith.constant 0 : index
    %28 = vector.load %arg4[%c0_17, %c0_18] : memref<16x32xf32, #tpu.memory_space<vmem>>, vector<16x32xf32>
    %c0_19 = arith.constant 0 : index
    %c0_20 = arith.constant 0 : index
    %c0_21 = arith.constant 0 : index
    %29 = vector.load %arg10[%c0_19, %c0_20, %c0_21] : memref<1x32x32xf32, #tpu.memory_space<vmem>>, vector<1x32x32xf32>
    %30 = vector.shape_cast %29 : vector<1x32x32xf32> to vector<32x32xf32>
    %cst = arith.constant dense<0.000000e+00> : vector<16x32xf32>
    %31 = tpu.matmul %28, %30, %cst {dimension_numbers = #tpu.dot_dimension_numbers<[1], [0], [0], [1], [0, 0, 1, 1], [], []>} : vector<16x32xf32>, vector<32x32xf32>, vector<16x32xf32> -> vector<16x32xf32>
    %c0_22 = arith.constant 0 : index
    %c0_23 = arith.constant 0 : index
    %c0_24 = arith.constant 0 : index
    %32 = vector.load %arg11[%c0_22, %c0_23, %c0_24] : memref<1x1x32xf32, #tpu.memory_space<vmem>>, vector<1x1x32xf32>
    %33 = vector.shape_cast %32 : vector<1x1x32xf32> to vector<1x32xf32>
    %34 = vector.broadcast %33 : vector<1x32xf32> to vector<16x32xf32>
    %35 = arith.addf %31, %34 : vector<16x32xf32>
    %c0_25 = arith.constant 0 : index
    %c0_26 = arith.constant 0 : index
    %36 = vector.load %arg5[%c0_25, %c0_26] : memref<16x32xf32, #tpu.memory_space<vmem>>, vector<16x32xf32>
    %c0_27 = arith.constant 0 : index
    %c0_28 = arith.constant 0 : index
    %c0_29 = arith.constant 0 : index
    %37 = vector.load %arg12[%c0_27, %c0_28, %c0_29] : memref<1x32x32xf32, #tpu.memory_space<vmem>>, vector<1x32x32xf32>
    %38 = vector.shape_cast %37 : vector<1x32x32xf32> to vector<32x32xf32>
    %cst_30 = arith.constant dense<0.000000e+00> : vector<16x32xf32>
    %39 = tpu.matmul %36, %38, %cst_30 {dimension_numbers = #tpu.dot_dimension_numbers<[1], [0], [0], [1], [0, 0, 1, 1], [], []>} : vector<16x32xf32>, vector<32x32xf32>, vector<16x32xf32> -> vector<16x32xf32>
    %c0_31 = arith.constant 0 : index
    %c0_32 = arith.constant 0 : index
    %c0_33 = arith.constant 0 : index
    %40 = vector.load %arg13[%c0_31, %c0_32, %c0_33] : memref<1x1x32xf32, #tpu.memory_space<vmem>>, vector<1x1x32xf32>
    %41 = vector.shape_cast %40 : vector<1x1x32xf32> to vector<1x32xf32>
    %42 = vector.broadcast %41 : vector<1x32xf32> to vector<16x32xf32>
    %43 = arith.addf %39, %42 : vector<16x32xf32>
    %44 = tpu.concatenate %9, %35, %27, %43 in 1 : vector<16x32xf32>, vector<16x32xf32>, vector<16x32xf32>, vector<16x32xf32> -> vector<16x128xf32>
    %c0_34 = arith.constant 0 : index
    %c0_35 = arith.constant 0 : index
    %45 = vector.load %arg14[%c0_34, %c0_35] : memref<16x128xf32, #tpu.memory_space<vmem>>, vector<16x128xf32>
    tpu.vector_store %arg14[%c0_34, %c0_35], %44 {strides = array<i32>} : memref<16x128xf32, #tpu.memory_space<vmem>>, vector<16x128xf32>,
    return
  }
  func.func @transform_0(%arg0: i32, %arg1: memref<1xi32, #tpu.memory_space<smem>>) -> (i32, i32) {
    %c0_i32 = arith.constant 0 : i32
    %c0_i32_0 = arith.constant 0 : i32
    return %arg0, %c0_i32 : i32, i32
  }
  func.func @transform_1(%arg0: i32, %arg1: memref<1xi32, #tpu.memory_space<smem>>) -> (i32, i32) {
    %c0_i32 = arith.constant 0 : i32
    %c0_i32_0 = arith.constant 0 : i32
    return %arg0, %c0_i32 : i32, i32
  }
  func.func @transform_2(%arg0: i32, %arg1: memref<1xi32, #tpu.memory_space<smem>>) -> (i32, i32) {
    %c0_i32 = arith.constant 0 : i32
    %c0_i32_0 = arith.constant 0 : i32
    return %arg0, %c0_i32 : i32, i32
  }
  func.func @transform_3(%arg0: i32, %arg1: memref<1xi32, #tpu.memory_space<smem>>) -> (i32, i32) {
    %c0_i32 = arith.constant 0 : i32
    %c0_i32_0 = arith.constant 0 : i32
    return %arg0, %c0_i32 : i32, i32
  }
  func.func @transform_4(%arg0: i32, %arg1: memref<1xi32, #tpu.memory_space<smem>>) -> (i32, i32, i32) {
    %c0 = arith.constant 0 : index
    %0 = memref.load %arg1[%c0] : memref<1xi32, #tpu.memory_space<smem>>
    %c0_i32 = arith.constant 0 : i32
    %c0_i32_0 = arith.constant 0 : i32
    %c0_i32_1 = arith.constant 0 : i32
    return %0, %c0_i32, %c0_i32_0 : i32, i32, i32
  }
  func.func @transform_5(%arg0: i32, %arg1: memref<1xi32, #tpu.memory_space<smem>>) -> (i32, i32, i32) {
    %c0 = arith.constant 0 : index
    %0 = memref.load %arg1[%c0] : memref<1xi32, #tpu.memory_space<smem>>
    %c0_i32 = arith.constant 0 : i32
    %c0_i32_0 = arith.constant 0 : i32
    %c0_i32_1 = arith.constant 0 : i32
    return %0, %c0_i32, %c0_i32_0 : i32, i32, i32
  }
  func.func @transform_6(%arg0: i32, %arg1: memref<1xi32, #tpu.memory_space<smem>>) -> (i32, i32, i32) {
    %c0 = arith.constant 0 : index
    %0 = memref.load %arg1[%c0] : memref<1xi32, #tpu.memory_space<smem>>
    %c0_i32 = arith.constant 0 : i32
    %c0_i32_0 = arith.constant 0 : i32
    %c0_i32_1 = arith.constant 0 : i32
    return %0, %c0_i32, %c0_i32_0 : i32, i32, i32
  }
  func.func @transform_7(%arg0: i32, %arg1: memref<1xi32, #tpu.memory_space<smem>>) -> (i32, i32, i32) {
    %c0 = arith.constant 0 : index
    %0 = memref.load %arg1[%c0] : memref<1xi32, #tpu.memory_space<smem>>
    %c0_i32 = arith.constant 0 : i32
    %c0_i32_0 = arith.constant 0 : i32
    %c0_i32_1 = arith.constant 0 : i32
    return %0, %c0_i32, %c0_i32_0 : i32, i32, i32
  }
  func.func @transform_8(%arg0: i32, %arg1: memref<1xi32, #tpu.memory_space<smem>>) -> (i32, i32, i32) {
    %c0 = arith.constant 0 : index
    %0 = memref.load %arg1[%c0] : memref<1xi32, #tpu.memory_space<smem>>
    %c0_i32 = arith.constant 0 : i32
    %c0_i32_0 = arith.constant 0 : i32
    %c0_i32_1 = arith.constant 0 : i32
    return %0, %c0_i32, %c0_i32_0 : i32, i32, i32
  }
  func.func @transform_9(%arg0: i32, %arg1: memref<1xi32, #tpu.memory_space<smem>>) -> (i32, i32, i32) {
    %c0 = arith.constant 0 : index
    %0 = memref.load %arg1[%c0] : memref<1xi32, #tpu.memory_space<smem>>
    %c0_i32 = arith.constant 0 : i32
    %c0_i32_0 = arith.constant 0 : i32
    %c0_i32_1 = arith.constant 0 : i32
    return %0, %c0_i32, %c0_i32_0 : i32, i32, i32
  }
  func.func @transform_10(%arg0: i32, %arg1: memref<1xi32, #tpu.memory_space<smem>>) -> (i32, i32, i32) {
    %c0 = arith.constant 0 : index
    %0 = memref.load %arg1[%c0] : memref<1xi32, #tpu.memory_space<smem>>
    %c0_i32 = arith.constant 0 : i32
    %c0_i32_0 = arith.constant 0 : i32
    %c0_i32_1 = arith.constant 0 : i32
    return %0, %c0_i32, %c0_i32_0 : i32, i32, i32
  }
  func.func @transform_11(%arg0: i32, %arg1: memref<1xi32, #tpu.memory_space<smem>>) -> (i32, i32, i32) {
    %c0 = arith.constant 0 : index
    %0 = memref.load %arg1[%c0] : memref<1xi32, #tpu.memory_space<smem>>
    %c0_i32 = arith.constant 0 : i32
    %c0_i32_0 = arith.constant 0 : i32
    %c0_i32_1 = arith.constant 0 : i32
    return %0, %c0_i32, %c0_i32_0 : i32, i32, i32
  }
  func.func @transform_12(%arg0: i32, %arg1: memref<1xi32, #tpu.memory_space<smem>>) -> (i32, i32) {
    %c0_i32 = arith.constant 0 : i32
    %c0_i32_0 = arith.constant 0 : i32
    return %arg0, %c0_i32 : i32, i32
  }
}

</mosaic_0001>

<llo_original>
// kernel: tpu_custom_call.1
$region0: #{tpu_custom_call.1}
  #allocation0 [shape = 'u32[]', space=smem, size = 0x4, offset = 0x4, fixed_abs, tag = 'smem constant byte address 0x4 - core index']
  #allocation1 [shape = 'u32[144,128]{1,0:T(1,128)}', space=vmem, size = 0x12000, scoped, tag = 'internal scratch']
  #allocation2 [shape = 's32[1]{0}', space=sflag, size = 0x4, scoped, tag = 'scoped memory for tpu_custom_call.1']
  #allocation3 [shape = 's32[1]{0:T(128)S(6)}', space=smem, size = 0x200, scoped, tag = 'prefetched SMEM operand 0']
  %s0 = inlined_call_operand.<no memory space> [shape: s32[1], index: 0, kind: input, shape index: {}]
  %s1 = inlined_call_operand.vmem [shape: f32[16,1], index: 1, kind: input, shape index: {}]
  %s2 = inlined_call_operand.vmem [shape: f32[16,2], index: 2, kind: input, shape index: {}]
  %s3 = inlined_call_operand.vmem [shape: f32[16,32], index: 3, kind: input, shape index: {}]
  %s4 = inlined_call_operand.vmem [shape: f32[16,32], index: 4, kind: input, shape index: {}]
  %s5 = inlined_call_operand.hbm [shape: f32[6,1,32], index: 5, kind: input, shape index: {}]
  %s6 = inlined_call_operand.hbm [shape: f32[6,1,32], index: 6, kind: input, shape index: {}]
  %s7 = inlined_call_operand.vmem [shape: f32[6,2,32], index: 7, kind: input, shape index: {}]
  %s8 = inlined_call_operand.hbm [shape: f32[6,1,32], index: 8, kind: input, shape index: {}]
  %s9 = inlined_call_operand.hbm [shape: f32[6,32,32], index: 9, kind: input, shape index: {}]
  %s10 = inlined_call_operand.vmem [shape: f32[6,1,32], index: 10, kind: input, shape index: {}]
  %s11 = inlined_call_operand.hbm [shape: f32[6,32,32], index: 11, kind: input, shape index: {}]
  %s12 = inlined_call_operand.vmem [shape: f32[6,1,32], index: 12, kind: input, shape index: {}]
  %s13 = inlined_call_operand.hbm [shape: f32[16,128], index: 13, kind: output, shape index: {}]
  %s14 = sld [smem:[#allocation0]]
  $region78: #{tpu_custom_call.1} parent=0
    _
  %s16 = ssub.s32 1, %s14
  %s17 = scalar_select 0, %s16, %s14
  %18 = sst [smem:[#allocation3]] %s0
  $region1: #{tpu_custom_call.1} parent=0
    #allocation4 [shape = 'u8[512]{0}', space=vmem, size = 0x400, scoped, tag = 'input window, operand 5, single buffered']
    #allocation5 [shape = 's32[1]{0}', space=sflag, size = 0x4, scoped, tag = 'scoped memory for tpu_custom_call.1']
    #allocation6 [shape = 's32[1]{0}', space=sflag, size = 0x4, scoped, tag = 'scoped memory for tpu_custom_call.1']
    #allocation7 [shape = 'u8[512]{0}', space=vmem, size = 0x400, scoped, tag = 'input window, operand 6, single buffered']
    #allocation8 [shape = 's32[1]{0}', space=sflag, size = 0x4, scoped, tag = 'scoped memory for tpu_custom_call.1']
    #allocation9 [shape = 'u8[512]{0}', space=vmem, size = 0x400, scoped, tag = 'input window, operand 8, single buffered']
    #allocation10 [shape = 'u8[16384]{0}', space=vmem, size = 0x4000, scoped, tag = 'input window, operand 9, single buffered']
    #allocation11 [shape = 's32[1]{0}', space=sflag, size = 0x4, scoped, tag = 'scoped memory for tpu_custom_call.1']
    #allocation12 [shape = 'u8[16384]{0}', space=vmem, size = 0x4000, scoped, tag = 'input window, operand 11, single buffered']
    #allocation13 [shape = 'u8[8192]{0}', space=vmem, size = 0x2000, scoped, tag = 'output window, operand 0, single buffered']
    %19 = vsyncpa [#allocation5], 0
    %20 = vsyncpa [#allocation8], 0
    %21 = vsyncpa [#allocation11], 0
    %22 = vsyncpa [#allocation6], 0
    // Predicated region
    $region2: #{tpu_custom_call.1} parent=1 // pred_check
      _
    $region3: #{tpu_custom_call.1} parent=1 // pred_check_branch
      %24 = sbr.rel (0) target = $region5
    $region4: #{tpu_custom_call.1} parent=1 // pred_region
      _
    $region5: #{tpu_custom_call.1} parent=1 // pred_fallthru
      _
    // Predicated region
    $region6: #{tpu_custom_call.1} parent=1 // pred_check
      _
    $region7: #{tpu_custom_call.1} parent=1 // pred_check_branch
      %26 = sbr.rel (0) target = $region9
    $region8: #{tpu_custom_call.1} parent=1 // pred_region
      _
    $region9: #{tpu_custom_call.1} parent=1 // pred_fallthru
      _
    // Predicated region
    $region10: #{tpu_custom_call.1} parent=1 // pred_check
      _
    $region11: #{tpu_custom_call.1} parent=1 // pred_check_branch
      %28 = sbr.rel (0) target = $region13
    $region12: #{tpu_custom_call.1} parent=1 // pred_region
      _
    $region13: #{tpu_custom_call.1} parent=1 // pred_fallthru
      _
    // Predicated region
    $region14: #{tpu_custom_call.1} parent=1 // pred_check
      _
    $region15: #{tpu_custom_call.1} parent=1 // pred_check_branch
      %30 = sbr.rel (0) target = $region17
    $region16: #{tpu_custom_call.1} parent=1 // pred_region
      _
    $region17: #{tpu_custom_call.1} parent=1 // pred_fallthru
      _
    // Predicated region
    $region18: #{tpu_custom_call.1} parent=1 // pred_check
      _
    $region19: #{tpu_custom_call.1} parent=1 // pred_check_branch
      %32 = sbr.rel (0) target = $region21
    $region20: #{tpu_custom_call.1} parent=1 // pred_region
      %s33 = sld [smem:[#allocation3]]
      %s35 = ssub.s32 16, 16
      %36 = vsyncadd [#allocation5], %s35
      %s37 = smul.addr %s33, 16
      %s38 = scalar_lea.hbm %s5, %s37
      %s40 = sshll.u32 [#allocation4], 4
      %s41 = int_to_ptr.vmem [resolvable:$true] %s40
      %43 = dma.hbm_to_vmem [thread:$0]  %s38, 16, %s41, [#allocation5]
    $region21: #{tpu_custom_call.1} parent=1 // pred_fallthru
      _
    // Predicated region
    $region22: #{tpu_custom_call.1} parent=1 // pred_check
      _
    $region23: #{tpu_custom_call.1} parent=1 // pred_check_branch
      %45 = sbr.rel (0) target = $region25
    $region24: #{tpu_custom_call.1} parent=1 // pred_region
      %s46 = sld [smem:[#allocation3]]
      %s48 = ssub.s32 16, 16
      %49 = vsyncadd [#allocation8], %s48
      %s50 = smul.addr %s46, 16
      %s51 = scalar_lea.hbm %s6, %s50
      %s53 = sshll.u32 [#allocation7], 4
      %s54 = int_to_ptr.vmem [resolvable:$true] %s53
      %56 = dma.hbm_to_vmem [thread:$0]  %s51, 16, %s54, [#allocation8]
    $region25: #{tpu_custom_call.1} parent=1 // pred_fallthru
      _
    // Predicated region
    $region26: #{tpu_custom_call.1} parent=1 // pred_check
      _
    $region27: #{tpu_custom_call.1} parent=1 // pred_check_branch
      %58 = sbr.rel (0) target = $region29
    $region28: #{tpu_custom_call.1} parent=1 // pred_region
      %s59 = sld [smem:[#allocation3]]
      %p60 = scmp.lt.s32.totalorder %s59, 5
      %s61 = scalar_select %p60, %s59, 5
      %s62 = smul.addr %s61, 2
      %s63 = scalar_lea.vmem %s7, %s62
      %s64 = sld [smem:[#allocation3]]
    $region29: #{tpu_custom_call.1} parent=1 // pred_fallthru
      _
    // Predicated region
    $region30: #{tpu_custom_call.1} parent=1 // pred_check
      _
    $region31: #{tpu_custom_call.1} parent=1 // pred_check_branch
      %66 = sbr.rel (0) target = $region33
    $region32: #{tpu_custom_call.1} parent=1 // pred_region
      %s67 = sld [smem:[#allocation3]]
      %s69 = ssub.s32 16, 16
      %70 = vsyncadd [#allocation8], %s69
      %s71 = smul.addr %s67, 16
      %s72 = scalar_lea.hbm %s8, %s71
      %s74 = sshll.u32 [#allocation9], 4
      %s75 = int_to_ptr.vmem [resolvable:$true] %s74
      %77 = dma.hbm_to_vmem [thread:$0]  %s72, 16, %s75, [#allocation8]
    $region33: #{tpu_custom_call.1} parent=1 // pred_fallthru
      _
    // Predicated region
    $region34: #{tpu_custom_call.1} parent=1 // pred_check
      _
    $region35: #{tpu_custom_call.1} parent=1 // pred_check_branch
      %79 = sbr.rel (0) target = $region37
    $region36: #{tpu_custom_call.1} parent=1 // pred_region
      %s80 = sld [smem:[#allocation3]]
      %s82 = ssub.s32 512, 512
      %83 = vsyncadd [#allocation11], %s82
      %s84 = smul.addr %s80, 4
      %s85 = smul.addr %s84, 128
      %s86 = scalar_lea.hbm %s9, %s85
      %s87 = sshll.u32 [#allocation10], 4
      %s88 = int_to_ptr.vmem [resolvable:$true] %s87
      %93 = dma.hbm_to_vmem [thread:$0]  %s86, 512, %s88, [#allocation11], 128, 128, 8
    $region37: #{tpu_custom_call.1} parent=1 // pred_fallthru
      _
    // Predicated region
    $region38: #{tpu_custom_call.1} parent=1 // pred_check
      _
    $region39: #{tpu_custom_call.1} parent=1 // pred_check_branch
      %95 = sbr.rel (0) target = $region41
    $region40: #{tpu_custom_call.1} parent=1 // pred_region
      %s96 = sld [smem:[#allocation3]]
      %p97 = scmp.lt.s32.totalorder %s96, 5
      %s98 = scalar_select %p97, %s96, 5
      %s99 = scalar_lea.vmem %s10, %s98
      %s100 = sld [smem:[#allocation3]]
    $region41: #{tpu_custom_call.1} parent=1 // pred_fallthru
      _
    // Predicated region
    $region42: #{tpu_custom_call.1} parent=1 // pred_check
      _
    $region43: #{tpu_custom_call.1} parent=1 // pred_check_branch
      %102 = sbr.rel (0) target = $region45
    $region44: #{tpu_custom_call.1} parent=1 // pred_region
      %s103 = sld [smem:[#allocation3]]
      %s105 = ssub.s32 512, 512
      %106 = vsyncadd [#allocation11], %s105
      %s107 = smul.addr %s103, 4
      %s108 = smul.addr %s107, 128
      %s109 = scalar_lea.hbm %s11, %s108
      %s110 = sshll.u32 [#allocation12], 4
      %s111 = int_to_ptr.vmem [resolvable:$true] %s110
      %116 = dma.hbm_to_vmem [thread:$0]  %s109, 512, %s111, [#allocation11], 128, 128, 8
    $region45: #{tpu_custom_call.1} parent=1 // pred_fallthru
      _
    // Predicated region
    $region46: #{tpu_custom_call.1} parent=1 // pred_check
      _
    $region47: #{tpu_custom_call.1} parent=1 // pred_check_branch
      %118 = sbr.rel (0) target = $region49
    $region48: #{tpu_custom_call.1} parent=1 // pred_region
      %s119 = sld [smem:[#allocation3]]
      %p120 = scmp.lt.s32.totalorder %s119, 5
      %s121 = scalar_select %p120, %s119, 5
      %s122 = scalar_lea.vmem %s12, %s121
      %s123 = sld [smem:[#allocation3]]
    $region49: #{tpu_custom_call.1} parent=1 // pred_fallthru
      _
    // Predicated region
    $region50: #{tpu_custom_call.1} parent=1 // pred_check
      _
    $region51: #{tpu_custom_call.1} parent=1 // pred_check_branch
      %125 = sbr.rel (0) target = $region53
    $region52: #{tpu_custom_call.1} parent=1 // pred_region
      %126 = dma.done [#allocation5], 16
    $region53: #{tpu_custom_call.1} parent=1 // pred_fallthru
      _
    // Predicated region
    $region54: #{tpu_custom_call.1} parent=1 // pred_check
      _
    $region55: #{tpu_custom_call.1} parent=1 // pred_check_branch
      %128 = sbr.rel (0) target = $region57
    $region56: #{tpu_custom_call.1} parent=1 // pred_region
      %129 = dma.done [#allocation8], 16
    $region57: #{tpu_custom_call.1} parent=1 // pred_fallthru
      _
    // Predicated region
    $region58: #{tpu_custom_call.1} parent=1 // pred_check
      _
    $region59: #{tpu_custom_call.1} parent=1 // pred_check_branch
      %131 = sbr.rel (0) target = $region61
    $region60: #{tpu_custom_call.1} parent=1 // pred_region
      %132 = dma.done [#allocation8], 16
    $region61: #{tpu_custom_call.1} parent=1 // pred_fallthru
      _
    // Predicated region
    $region62: #{tpu_custom_call.1} parent=1 // pred_check
      _
    $region63: #{tpu_custom_call.1} parent=1 // pred_check_branch
      %134 = sbr.rel (0) target = $region65
    $region64: #{tpu_custom_call.1} parent=1 // pred_region
      %135 = dma.done [#allocation11], 512
    $region65: #{tpu_custom_call.1} parent=1 // pred_fallthru
      _
    // Predicated region
    $region66: #{tpu_custom_call.1} parent=1 // pred_check
      _
    $region67: #{tpu_custom_call.1} parent=1 // pred_check_branch
      %137 = sbr.rel (0) target = $region69
    $region68: #{tpu_custom_call.1} parent=1 // pred_region
      %138 = dma.done [#allocation11], 512
    $region69: #{tpu_custom_call.1} parent=1 // pred_fallthru
      _
    %s139 = sld [smem:[#allocation3]]
    %p140 = scmp.lt.s32.totalorder %s139, 5
    %s141 = scalar_select %p140, %s139, 5
    %s142 = smul.addr %s141, 2
    %s143 = scalar_lea.vmem %s7, %s142
    %s144 = sld [smem:[#allocation3]]
    %p145 = scmp.lt.s32.totalorder %s144, 5
    %s146 = scalar_select %p145, %s144, 5
    %s147 = scalar_lea.vmem %s10, %s146
    %s148 = sld [smem:[#allocation3]]
    %p149 = scmp.lt.s32.totalorder %s148, 5
    %s150 = scalar_select %p149, %s148, 5
    %s151 = scalar_lea.vmem %s12, %s150
    %s152 = sld [smem:[#allocation3]]
    %s153 = sld [smem:[#allocation3]]
    %s154 = sld [smem:[#allocation3]]
    %p155 = scmp.lt.s32.totalorder %s154, 5
    %s156 = scalar_select %p155, %s154, 5
    %s157 = smul.addr %s156, 2
    %s158 = scalar_lea.vmem %s7, %s157
    %s159 = sld [smem:[#allocation3]]
    %s160 = sld [smem:[#allocation3]]
    %s161 = sld [smem:[#allocation3]]
    %s162 = sld [smem:[#allocation3]]
    %p163 = scmp.lt.s32.totalorder %s162, 5
    %s164 = scalar_select %p163, %s162, 5
    %s165 = scalar_lea.vmem %s10, %s164
    %s166 = sld [smem:[#allocation3]]
    %s167 = sld [smem:[#allocation3]]
    %s168 = sld [smem:[#allocation3]]
    %p169 = scmp.lt.s32.totalorder %s168, 5
    %s170 = scalar_select %p169, %s168, 5
    %s171 = scalar_lea.vmem %s12, %s170
    %s172 = sld [smem:[#allocation3]]
    %v173 = vld [vmem:[%s1] sm:$0xff]
    %v174 = vld [vmem:[%s1 + $0x8] sm:$0xff]
    %v175 = vld [vmem:[#allocation4] sm:$0x1]
    %177 = vset.pattern.permute.xlu0 0
    %178 = vperm.xlu0 %177, %v173
    %v179 = vpop.permute.xlu0 %178
    %182 = vset.pattern.permute.xlu0 0
    %183 = vperm.xlu0 %182, %v174
    %v184 = vpop.permute.xlu0 %183
    %v187 = vlaneseq
    %v188 = vshrl.u32 %v187, 7
    %v189 = vsub.s32 0, %v188
    %v190 = vrot.slane %v175, %v189
    %v192 = vmul.f32 %v179, %v190
    %v193 = vmul.f32 %v184, %v190
    %v194 = vld [vmem:[#allocation7] sm:$0x1]
    %v196 = vlaneseq
    %v197 = vshrl.u32 %v196, 7
    %v198 = vsub.s32 0, %v197
    %v199 = vrot.slane %v194, %v198
    %v201 = vadd.f32 %v192, %v199
    %v202 = vadd.f32 %v193, %v199
    %v203 = vld [vmem:[%s2] sm:$0xff]
    %v204 = vld [vmem:[%s2 + $0x8] sm:$0xff]
    %v205 = vld [vmem:[%s158] sm:$0x1]
    %207 = vset.pattern.permute.xlu0 0
    %208 = vperm.xlu0 %207, %v203
    %v209 = vpop.permute.xlu0 %208
    %212 = vset.pattern.permute.xlu0 0
    %213 = vperm.xlu0 %212, %v204
    %v214 = vpop.permute.xlu0 %213
    %v216 = vlaneseq
    %v217 = vshrl.u32 %v216, 7
    %v218 = vsub.s32 0, %v217
    %v219 = vrot.slane %v205, %v218
    %v220 = vmul.f32 %v209, %v219
    %v221 = vmul.f32 %v214, %v219
    %v222 = vld [vmem:[%s158 + $0x1] sm:$0x1]
    %223 = vset.pattern.permute.xlu0 1
    %224 = vperm.xlu0 %223, %v203
    %v225 = vpop.permute.xlu0 %224
    %227 = vset.pattern.permute.xlu0 1
    %228 = vperm.xlu0 %227, %v204
    %v229 = vpop.permute.xlu0 %228
    %v231 = vlaneseq
    %v232 = vshrl.u32 %v231, 7
    %v233 = vsub.s32 0, %v232
    %v234 = vrot.slane %v222, %v233
    %v235 = vmul.f32 %v225, %v234
    %v236 = vmul.f32 %v229, %v234
    %v237 = vadd.f32 %v220, %v235
    %v238 = vadd.f32 %v221, %v236
    %v239 = vld [vmem:[#allocation9] sm:$0x1]
    %v241 = vlaneseq
    %v242 = vshrl.u32 %v241, 7
    %v243 = vsub.s32 0, %v242
    %v244 = vrot.slane %v239, %v243
    %v246 = vadd.f32 %v237, %v244
    %v247 = vadd.f32 %v238, %v244
    %v248 = vld [vmem:[%s3] sm:$0xff]
    %v249 = vld [vmem:[%s3 + $0x8] sm:$0xff]
    %v250 = vld [vmem:[#allocation10] sm:$0xff]
    %v251 = vld [vmem:[#allocation10 + $0x8] sm:$0xff]
    %v252 = vld [vmem:[#allocation10 + $0x10] sm:$0xff]
    %v253 = vld [vmem:[#allocation10 + $0x18] sm:$0xff]
    %v254 = vld [vmem:[%s165] sm:$0x1]
    %v256 = vlaneseq
    %v257 = vshrl.u32 %v256, 7
    %v258 = vsub.s32 0, %v257
    %v259 = vrot.slane %v254, %v258
    %vm261 = vcmask 261120
    %v263 = vsel %vm261, %v248, 0
    %v266 = vsel %vm261, %v249, 0
    %268 = vmatprep.subr.mxu0 0.0
    %269 = vmatpush1.msra.mxu0 0.0
    %270 = vmatprep.subr.mxu0 0.0
    %271 = vmatpush1.msra.mxu0 0.0
    %272 = vmatprep.subr.mxu0 0.0
    %273 = vmatpush1.msra.mxu0 0.0
    %274 = vmatprep.subr.mxu0 0.0
    %275 = vmatpush1.msra.mxu0 0.0
    %276 = vmatprep.subr.mxu0 0.0
    %277 = vmatpush1.msra.mxu0 0.0
    %278 = vmatprep.subr.mxu0 0.0
    %279 = vmatpush1.msra.mxu0 0.0
    %280 = vmatprep.subr.mxu0 0.0
    %281 = vmatpush1.msra.mxu0 0.0
    %282 = vmatprep.subr.mxu0 0.0
    %283 = vmatpush1.msra.mxu0 0.0
    %284 = vmatprep.subr.mxu0 0.0
    %285 = vmatpush1.msra.mxu0 0.0
    %286 = vmatprep.subr.mxu0 0.0
    %287 = vmatpush1.msra.mxu0 0.0
    %288 = vmatprep.subr.mxu0 0.0
    %289 = vmatpush1.msra.mxu0 0.0
    %290 = vmatprep.subr.mxu0 0.0
    %291 = vmatpush1.msra.mxu0 0.0
    %292 = vmatprep.subr.mxu0 0.0
    %293 = vmatpush1.msra.mxu0 %v253
    %294 = vmatprep.subr.mxu0 0.0
    %295 = vmatpush1.msra.mxu0 %v252
    %296 = vmatprep.subr.mxu0 0.0
    %297 = vmatpush1.msra.mxu0 %v251
    %298 = vmatprep.subr.mxu0 0.0
    %299 = vmatpush1.msra.mxu0 %v250
    %300 = vmatprep.subr.mxu0 0.0
    %301 = vmatpush2.msra.mxu0 0.0
    %302 = vmatprep.subr.mxu0 0.0
    %303 = vmatpush2.msra.mxu0 0.0
    %304 = vmatprep.subr.mxu0 0.0
    %305 = vmatpush2.msra.mxu0 0.0
    %306 = vmatprep.subr.mxu0 0.0
    %307 = vmatpush2.msra.mxu0 0.0
    %308 = vmatprep.subr.mxu0 0.0
    %309 = vmatpush2.msra.mxu0 0.0
    %310 = vmatprep.subr.mxu0 0.0
    %311 = vmatpush2.msra.mxu0 0.0
    %312 = vmatprep.subr.mxu0 0.0
    %313 = vmatpush2.msra.mxu0 0.0
    %314 = vmatprep.subr.mxu0 0.0
    %315 = vmatpush2.msra.mxu0 0.0
    %316 = vmatprep.subr.mxu0 0.0
    %317 = vmatpush2.msra.mxu0 0.0
    %318 = vmatprep.subr.mxu0 0.0
    %319 = vmatpush2.msra.mxu0 0.0
    %320 = vmatprep.subr.mxu0 0.0
    %321 = vmatpush2.msra.mxu0 0.0
    %322 = vmatprep.subr.mxu0 0.0
    %323 = vmatpush2.msra.mxu0 0.0
    %324 = vmatprep.subr.mxu0 0.0
    %325 = vmatpush2.msra.mxu0 0.0
    %326 = vmatprep.subr.mxu0 0.0
    %327 = vmatpush2.msra.mxu0 0.0
    %328 = vmatprep.subr.mxu0 0.0
    %329 = vmatpush2.msra.mxu0 0.0
    %330 = vmatprep.subr.mxu0 0.0
    %331 = vmatpush2.msra.mxu0 0.0
    %332 = vmatprep.mubr.f32.mxu0 0.0
    %333 = vmatmul.mubr.f32.gmra.mxu0 %v263
    %v334 = vpop.f32.mrf.mxu0
    %v335 = vadd.f32 %v259, %v334
    %v336 = vpop.f32.mrf.mxu0
    %337 = vmatprep.mubr.f32.mxu0 0.0
    %338 = vmatmul.mubr.f32.gmra.mxu0 %v266
    %v339 = vpop.f32.mrf.mxu0
    %v340 = vadd.f32 %v259, %v339
    %v341 = vpop.f32.mrf.mxu0
    %342 = vdwg.mxu0
    %v343 = vld [vmem:[%s4] sm:$0xff]
    %v344 = vld [vmem:[%s4 + $0x8] sm:$0xff]
    %v345 = vld [vmem:[#allocation12] sm:$0xff]
    %v346 = vld [vmem:[#allocation12 + $0x8] sm:$0xff]
    %v347 = vld [vmem:[#allocation12 + $0x10] sm:$0xff]
    %v348 = vld [vmem:[#allocation12 + $0x18] sm:$0xff]
    %v349 = vld [vmem:[%s171] sm:$0x1]
    %v351 = vlaneseq
    %v352 = vshrl.u32 %v351, 7
    %v353 = vsub.s32 0, %v352
    %v354 = vrot.slane %v349, %v353
    %v357 = vsel %vm261, %v343, 0
    %v360 = vsel %vm261, %v344, 0
    %362 = vmatprep.subr.mxu0 0.0
    %363 = vmatpush1.msra.mxu0 0.0
    %364 = vmatprep.subr.mxu0 0.0
    %365 = vmatpush1.msra.mxu0 0.0
    %366 = vmatprep.subr.mxu0 0.0
    %367 = vmatpush1.msra.mxu0 0.0
    %368 = vmatprep.subr.mxu0 0.0
    %369 = vmatpush1.msra.mxu0 0.0
    %370 = vmatprep.subr.mxu0 0.0
    %371 = vmatpush1.msra.mxu0 0.0
    %372 = vmatprep.subr.mxu0 0.0
    %373 = vmatpush1.msra.mxu0 0.0
    %374 = vmatprep.subr.mxu0 0.0
    %375 = vmatpush1.msra.mxu0 0.0
    %376 = vmatprep.subr.mxu0 0.0
    %377 = vmatpush1.msra.mxu0 0.0
    %378 = vmatprep.subr.mxu0 0.0
    %379 = vmatpush1.msra.mxu0 0.0
    %380 = vmatprep.subr.mxu0 0.0
    %381 = vmatpush1.msra.mxu0 0.0
    %382 = vmatprep.subr.mxu0 0.0
    %383 = vmatpush1.msra.mxu0 0.0
    %384 = vmatprep.subr.mxu0 0.0
    %385 = vmatpush1.msra.mxu0 0.0
    %386 = vmatprep.subr.mxu0 0.0
    %387 = vmatpush1.msra.mxu0 %v348
    %388 = vmatprep.subr.mxu0 0.0
    %389 = vmatpush1.msra.mxu0 %v347
    %390 = vmatprep.subr.mxu0 0.0
    %391 = vmatpush1.msra.mxu0 %v346
    %392 = vmatprep.subr.mxu0 0.0
    %393 = vmatpush1.msra.mxu0 %v345
    %394 = vmatprep.subr.mxu0 0.0
    %395 = vmatpush2.msra.mxu0 0.0
    %396 = vmatprep.subr.mxu0 0.0
    %397 = vmatpush2.msra.mxu0 0.0
    %398 = vmatprep.subr.mxu0 0.0
    %399 = vmatpush2.msra.mxu0 0.0
    %400 = vmatprep.subr.mxu0 0.0
    %401 = vmatpush2.msra.mxu0 0.0
    %402 = vmatprep.subr.mxu0 0.0
    %403 = vmatpush2.msra.mxu0 0.0
    %404 = vmatprep.subr.mxu0 0.0
    %405 = vmatpush2.msra.mxu0 0.0
    %406 = vmatprep.subr.mxu0 0.0
    %407 = vmatpush2.msra.mxu0 0.0
    %408 = vmatprep.subr.mxu0 0.0
    %409 = vmatpush2.msra.mxu0 0.0
    %410 = vmatprep.subr.mxu0 0.0
    %411 = vmatpush2.msra.mxu0 0.0
    %412 = vmatprep.subr.mxu0 0.0
    %413 = vmatpush2.msra.mxu0 0.0
    %414 = vmatprep.subr.mxu0 0.0
    %415 = vmatpush2.msra.mxu0 0.0
    %416 = vmatprep.subr.mxu0 0.0
    %417 = vmatpush2.msra.mxu0 0.0
    %418 = vmatprep.subr.mxu0 0.0
    %419 = vmatpush2.msra.mxu0 0.0
    %420 = vmatprep.subr.mxu0 0.0
    %421 = vmatpush2.msra.mxu0 0.0
    %422 = vmatprep.subr.mxu0 0.0
    %423 = vmatpush2.msra.mxu0 0.0
    %424 = vmatprep.subr.mxu0 0.0
    %425 = vmatpush2.msra.mxu0 0.0
    %426 = vmatprep.mubr.f32.mxu0 0.0
    %427 = vmatmul.mubr.f32.gmra.mxu0 %v357
    %v428 = vpop.f32.mrf.mxu0
    %v429 = vadd.f32 %v354, %v428
    %v430 = vpop.f32.mrf.mxu0
    %431 = vmatprep.mubr.f32.mxu0 0.0
    %432 = vmatmul.mubr.f32.gmra.mxu0 %v360
    %v433 = vpop.f32.mrf.mxu0
    %v434 = vadd.f32 %v354, %v433
    %v435 = vpop.f32.mrf.mxu0
    %436 = vdwg.mxu0
    %439 = vrot.lane.b32.xlu0 %v335, 32
    %v440 = vpop.permute.xlu0 %439
    %441 = vrot.lane.b32.xlu0 %v340, 32
    %v442 = vpop.permute.xlu0 %441
    %447 = vrot.lane.b32.xlu0 %v246, 64
    %v448 = vpop.permute.xlu0 %447
    %449 = vrot.lane.b32.xlu0 %v247, 64
    %v450 = vpop.permute.xlu0 %449
    %455 = vrot.lane.b32.xlu0 %v429, 96
    %v456 = vpop.permute.xlu0 %455
    %457 = vrot.lane.b32.xlu0 %v434, 96
    %v458 = vpop.permute.xlu0 %457
    %v461 = vsel %vm261, %v201, %v440
    %v462 = vsel %vm261, %v202, %v442
    %vm463 = vcmask 523264
    %v464 = vsel %vm463, %v461, %v448
    %v465 = vsel %vm463, %v462, %v450
    %vm466 = vcmask 785408
    %v467 = vsel %vm466, %v464, %v456
    %v468 = vsel %vm466, %v465, %v458
    %469 = vst [vmem:[#allocation13] sm:$0xff] %v467
    %470 = vst [vmem:[#allocation13 + $0x8] sm:$0xff] %v468
    // Predicated region
    $region70: #{tpu_custom_call.1} parent=1 // pred_check
      _
    $region71: #{tpu_custom_call.1} parent=1 // pred_check_branch
      %472 = sbr.rel (0) target = $region73
    $region72: #{tpu_custom_call.1} parent=1 // pred_region
      %s474 = ssub.s32 256, 256
      %475 = vsyncadd [#allocation6], %s474
      %s476 = sshll.u32 [#allocation13], 4
      %s477 = int_to_ptr.vmem [resolvable:$true] %s476
      %482 = dma.vmem_to_hbm [thread:$0]  %s477, 256, %s13, [#allocation6], 128, 128, 8
    $region73: #{tpu_custom_call.1} parent=1 // pred_fallthru
      _
    // Predicated region
    $region74: #{tpu_custom_call.1} parent=1 // pred_check
      _
    $region75: #{tpu_custom_call.1} parent=1 // pred_check_branch
      %484 = sbr.rel (0) target = $region77
    $region76: #{tpu_custom_call.1} parent=1 // pred_region
      %485 = dma.done [#allocation6], 256
    $region77: #{tpu_custom_call.1} parent=1 // pred_fallthru
      _
    %486 = vsyncpa [#allocation5], 1
    %487 = vsyncpa [#allocation8], 1
    %488 = vsyncpa [#allocation11], 1
    %489 = vsyncpa [#allocation6], 1

</llo_original>
